<compile_context>
chip_gen: v7x
topology: tpu7x:2x2x1
jax: 0.10.0
libtpu: 0.0.40
codegen_flags: <defaults>
</compile_context>

<pallas_src>
import math

import jax
import jax.numpy as jnp
from jax.experimental import pallas as pl
from jax.experimental.pallas import tpu as pltpu

EPS = 1e-6


def _cdiv(a, b):
    return -(-a // b)


def _make_plain_kernel(d, eps):
    """LayerNorm over the last dim; one logical row per sublane (no lane packing)."""
    inv_n = 1.0 / d
    inv_nm1 = 1.0 / max(d - 1, 1)  # torch std is unbiased (N-1)
    # TODO(synk): d == 1 deviates from torch (unbiased std is NaN there); we clamp.

    def kernel(alpha_ref, beta_ref, x_ref, o_ref):
        x = x_ref[...].astype(jnp.float32)                        # (T, d)
        mean = jnp.sum(x, axis=-1, keepdims=True) * inv_n         # (T, 1)
        xc = x - mean                                             # two-pass: no cancellation
        var = jnp.sum(xc * xc, axis=-1, keepdims=True) * inv_nm1  # (T, 1)
        std = jnp.sqrt(var)
        alpha = alpha_ref[0, 0]
        beta = beta_ref[0, 0]
        scale = alpha / (std + eps)                               # exact, per-row (cheap)
        o_ref[...] = (xc * scale + beta).astype(o_ref.dtype)

    return kernel


def _make_packed_kernel(d, eps):
    """Lane-dense LayerNorm: `pack` logical rows per pd-wide physical row.

    Per-segment reductions use a thin (pd, W) segment-membership matrix; the
    broadcast back to lane layout uses its (W, pd) transpose. W = round_up(pack, 8),
    so MXU flops are ~4 * 2 * pd * W per packed row — trivially HBM-bound.
    """
    inv_n = 1.0 / d
    inv_nm1 = 1.0 / max(d - 1, 1)

    def kernel(alpha_ref, beta_ref, seg_ref, bc_ref, x_ref, o_ref):
        x = x_ref[...].astype(jnp.float32)                        # (T, pd)
        seg = seg_ref[...]                                        # (pd, W)
        bc = bc_ref[...]                                          # (W, pd)
        alpha = alpha_ref[0, 0]
        beta = beta_ref[0, 0]

        s = jnp.dot(x, seg, preferred_element_type=jnp.float32)              # (T, W) seg sums
        mean_b = jnp.dot(s * inv_n, bc, preferred_element_type=jnp.float32)  # (T, pd)
        xc = x - mean_b                                                      # two-pass
        sq = jnp.dot(xc * xc, seg, preferred_element_type=jnp.float32)       # (T, W)
        std = jnp.sqrt(sq * inv_nm1)                                         # (T, W)
        scale = alpha / (std + eps)                               # exact divide on thin stats
        scale_b = jnp.dot(scale, bc, preferred_element_type=jnp.float32)     # (T, pd)
        o_ref[...] = (xc * scale_b + beta).astype(o_ref.dtype)

    return kernel


def layer_norm_pallas(x, alpha, beta, *, eps=EPS, max_tile_bytes=1 << 20):
    """x: (..., D); alpha/beta: scalar parameters (shape (1,) like the torch module)."""
    orig_shape = x.shape
    d = int(orig_shape[-1])
    rows = int(math.prod(orig_shape[:-1]))
    itemsize = jnp.dtype(x.dtype).itemsize
    row_unit = max(8, 32 // itemsize)  # 8 for f32, 16 for bf16, 32 for 8-bit packing

    # --- lane packing: keep the last (lane) dim a multiple of 128 when d < 128 ---
    pack, pd = 1, d
    if d < 128:
        lcm = (d * 128) // math.gcd(d, 128)
        if lcm <= 512:  # cap physical-row width so the thin matrices stay tiny
            pd = lcm
            pack = lcm // d

    x2 = x.reshape(rows, d)
    rows_packed = _cdiv(rows, pack)
    # Pad only when strictly needed: rows not divisible by pack, or fewer packed rows
    # than one aligned block (both are tiny pads; large tensors stay pad-free).
    rows_packed = max(rows_packed, row_unit)
    rows_padded = rows_packed * pack
    if rows_padded != rows:
        x2 = jnp.pad(x2, ((0, rows_padded - rows), (0, 0)))
    xp = x2.reshape(rows_packed, pd)  # contiguous row-major: free reshape

    # --- tile-row selection: ~1 MiB input blocks, and >= ~8 grid steps on medium
    #     inputs so the pipeline overlaps and both v7x TensorCores get work. ---
    if rows_packed <= row_unit:
        tile_rows = rows_packed                      # full extent (single step)
    else:
        target_steps = 8
        cap_bytes = max(row_unit, max_tile_bytes // (pd * itemsize))
        cap_steps = max(row_unit, _cdiv(rows_packed, target_steps))
        tile_rows = min(cap_bytes, cap_steps)
        tile_rows = (tile_rows // row_unit) * row_unit  # (8,128) block-shape constraint

    grid = (_cdiv(rows_packed, tile_rows),)          # ragged last block -> Pallas masks it

    alpha2 = jnp.asarray(alpha, jnp.float32).reshape(1, 1)
    beta2 = jnp.asarray(beta, jnp.float32).reshape(1, 1)

    smem_spec = pl.BlockSpec(memory_space=pltpu.MemorySpace.SMEM)
    x_spec = pl.BlockSpec((tile_rows, pd), lambda i: (i, 0))
    out_spec = pl.BlockSpec((tile_rows, pd), lambda i: (i, 0))

    if pack > 1:
        w = _cdiv(pack, 8) * 8                       # pad stats width to sublane multiple
        seg_ids = jnp.arange(pd, dtype=jnp.int32) // d
        col_ids = jnp.arange(w, dtype=jnp.int32)
        seg = (seg_ids[:, None] == col_ids[None, :]).astype(jnp.float32)   # (pd, w)
        bc = seg.T                                                          # (w, pd)
        kernel = _make_packed_kernel(d, eps)
        in_specs = [smem_spec, smem_spec,
                    pl.BlockSpec((pd, w), lambda i: (0, 0)),   # grid-invariant, tiny
                    pl.BlockSpec((w, pd), lambda i: (0, 0)),
                    x_spec]
        args = (alpha2, beta2, seg, bc, xp)
    else:
        kernel = _make_plain_kernel(d, eps)
        in_specs = [smem_spec, smem_spec, x_spec]
        args = (alpha2, beta2, xp)

    tile_bytes_f32 = tile_rows * pd * 4
    vmem_limit = int(min(64 << 20, max(32 << 20, 6 * tile_bytes_f32)))

    out = pl.pallas_call(
        kernel,
        out_shape=jax.ShapeDtypeStruct((rows_packed, pd), x.dtype),
        grid_spec=pltpu.PrefetchScalarGridSpec(
            num_scalar_prefetch=0,
            grid=grid,
            in_specs=in_specs,
            out_specs=out_spec,
        ),
        compiler_params=pltpu.CompilerParams(
            dimension_semantics=("parallel",),
            vmem_limit_bytes=vmem_limit,
        ),
    )(*args)

    out = out.reshape(rows_padded, d)
    if rows_padded != rows:
        out = out[:rows]
    return out.reshape(orig_shape)


def encoder_forward(x, mask, params):
    """Mirrors Encoder.forward: apply sub-layers (empty here), then LayerNormalization."""
    del mask  # no sub-layers consume it in this synthetic instantiation
    # for layer in self.layers: x = layer(x, mask)   # <- empty ModuleList (identity)
    return layer_norm_pallas(x, params["alpha"], params["beta"])


if __name__ == "__main__":
    key = jax.random.PRNGKey(0)
    batch, seq, d_model = 2, 8, 32

    x = jax.random.normal(key, (batch, seq, d_model), dtype=jnp.float32)
    mask = jnp.ones((batch, 1, seq, seq), dtype=jnp.float32)

    # Deterministic parameters matching LayerNormalization.__init__:
    # alpha = ones(1), beta = zeros(1)
    params = {"alpha": jnp.ones((1,), jnp.float32),
              "beta": jnp.zeros((1,), jnp.float32)}

    out = encoder_forward(x, mask, params)
    out = jax.block_until_ready(out)

    # Reference check in plain JAX (unbiased std, same formula as torch).
    mean = jnp.mean(x, axis=-1, keepdims=True)
    std = jnp.std(x, axis=-1, keepdims=True, ddof=1)
    ref = params["alpha"][0] * (x - mean) / (std + EPS) + params["beta"][0]
    assert jnp.allclose(out, ref, atol=1e-4, rtol=1e-4), "mismatch vs reference"

    print("KERNEL_OK")
</pallas_src>

<mosaic_0001>
module attributes {stable_mosaic.version = 11 : i64} {
  func.func @kernel(%arg0: i32, %arg1: memref<1x1xf32, #tpu.memory_space<smem>>, %arg2: memref<1x1xf32, #tpu.memory_space<smem>>, %arg3: memref<128x8xf32, #tpu.memory_space<vmem>>, %arg4: memref<8x128xf32, #tpu.memory_space<vmem>>, %arg5: memref<8x128xf32, #tpu.memory_space<vmem>>, %arg6: memref<8x128xf32, #tpu.memory_space<vmem>>) attributes {dimension_semantics = [#tpu.dimension_semantics<parallel>], iteration_bounds = array<i64: 1>, scalar_prefetch = 0 : i64, scratch_operands = 0 : i64, tpu.core_type = #tpu.core_type<tc>, window_params = [{transform_indices = @transform_0, window_bounds = array<i64: 1, 1>}, {transform_indices = @transform_1, window_bounds = array<i64: 1, 1>}, {pipeline_mode = #tpu.pipeline_mode<synchronous>, transform_indices = @transform_2, window_bounds = array<i64: 128, 8>}, {pipeline_mode = #tpu.pipeline_mode<synchronous>, transform_indices = @transform_3, window_bounds = array<i64: 8, 128>}, {transform_indices = @transform_4, window_bounds = array<i64: 8, 128>}, {transform_indices = @transform_5, window_bounds = array<i64: 8, 128>}]} {
    %c0 = arith.constant 0 : index
    %c0_0 = arith.constant 0 : index
    %0 = vector.load %arg5[%c0, %c0_0] : memref<8x128xf32, #tpu.memory_space<vmem>>, vector<8x128xf32>
    %c0_1 = arith.constant 0 : index
    %c0_2 = arith.constant 0 : index
    %1 = vector.load %arg3[%c0_1, %c0_2] : memref<128x8xf32, #tpu.memory_space<vmem>>, vector<128x8xf32>
    %c0_3 = arith.constant 0 : index
    %c0_4 = arith.constant 0 : index
    %2 = vector.load %arg4[%c0_3, %c0_4] : memref<8x128xf32, #tpu.memory_space<vmem>>, vector<8x128xf32>
    %c0_5 = arith.constant 0 : index
    %c0_6 = arith.constant 0 : index
    %3 = memref.load %arg1[%c0_5, %c0_6] : memref<1x1xf32, #tpu.memory_space<smem>>
    %c0_7 = arith.constant 0 : index
    %c0_8 = arith.constant 0 : index
    %4 = memref.load %arg2[%c0_7, %c0_8] : memref<1x1xf32, #tpu.memory_space<smem>>
    %cst = arith.constant dense<0.000000e+00> : vector<8x8xf32>
    %5 = tpu.matmul %0, %1, %cst {dimension_numbers = #tpu.dot_dimension_numbers<[1], [0], [0], [1], [0, 0, 1, 1], [], []>} : vector<8x128xf32>, vector<128x8xf32>, vector<8x8xf32> -> vector<8x8xf32>
    %cst_9 = arith.constant 3.125000e-02 : f32
    %6 = vector.broadcast %cst_9 : f32 to vector<8x8xf32>
    %7 = arith.mulf %5, %6 : vector<8x8xf32>
    %cst_10 = arith.constant dense<0.000000e+00> : vector<8x128xf32>
    %8 = tpu.matmul %7, %2, %cst_10 {dimension_numbers = #tpu.dot_dimension_numbers<[1], [0], [0], [1], [0, 0, 1, 1], [], []>} : vector<8x8xf32>, vector<8x128xf32>, vector<8x128xf32> -> vector<8x128xf32>
    %9 = arith.subf %0, %8 : vector<8x128xf32>
    %10 = arith.mulf %9, %9 : vector<8x128xf32>
    %cst_11 = arith.constant dense<0.000000e+00> : vector<8x8xf32>
    %11 = tpu.matmul %10, %1, %cst_11 {dimension_numbers = #tpu.dot_dimension_numbers<[1], [0], [0], [1], [0, 0, 1, 1], [], []>} : vector<8x128xf32>, vector<128x8xf32>, vector<8x8xf32> -> vector<8x8xf32>
    %cst_12 = arith.constant 0.0322580636 : f32
    %12 = vector.broadcast %cst_12 : f32 to vector<8x8xf32>
    %13 = arith.mulf %11, %12 : vector<8x8xf32>
    %14 = math.sqrt %13 : vector<8x8xf32>
    %cst_13 = arith.constant 9.99999997E-7 : f32
    %15 = vector.broadcast %cst_13 : f32 to vector<8x8xf32>
    %16 = arith.addf %14, %15 : vector<8x8xf32>
    %17 = vector.broadcast %3 : f32 to vector<8x8xf32>
    %18 = arith.divf %17, %16 : vector<8x8xf32>
    %cst_14 = arith.constant dense<0.000000e+00> : vector<8x128xf32>
    %19 = tpu.matmul %18, %2, %cst_14 {dimension_numbers = #tpu.dot_dimension_numbers<[1], [0], [0], [1], [0, 0, 1, 1], [], []>} : vector<8x8xf32>, vector<8x128xf32>, vector<8x128xf32> -> vector<8x128xf32>
    %20 = arith.mulf %9, %19 : vector<8x128xf32>
    %21 = vector.broadcast %4 : f32 to vector<8x128xf32>
    %22 = arith.addf %20, %21 : vector<8x128xf32>
    %c0_15 = arith.constant 0 : index
    %c0_16 = arith.constant 0 : index
    %23 = vector.load %arg6[%c0_15, %c0_16] : memref<8x128xf32, #tpu.memory_space<vmem>>, vector<8x128xf32>
    tpu.vector_store %arg6[%c0_15, %c0_16], %22 {strides = array<i32>} : memref<8x128xf32, #tpu.memory_space<vmem>>, vector<8x128xf32>,
    return
  }
  func.func @transform_0(%arg0: i32) -> (i32, i32) {
    %c0_i32 = arith.constant 0 : i32
    %c0_i32_0 = arith.constant 0 : i32
    %c0_i32_1 = arith.constant 0 : i32
    return %c0_i32, %c0_i32_0 : i32, i32
  }
  func.func @transform_1(%arg0: i32) -> (i32, i32) {
    %c0_i32 = arith.constant 0 : i32
    %c0_i32_0 = arith.constant 0 : i32
    %c0_i32_1 = arith.constant 0 : i32
    return %c0_i32, %c0_i32_0 : i32, i32
  }
  func.func @transform_2(%arg0: i32) -> (i32, i32) {
    %c0_i32 = arith.constant 0 : i32
    %c0_i32_0 = arith.constant 0 : i32
    %c0_i32_1 = arith.constant 0 : i32
    return %c0_i32, %c0_i32_0 : i32, i32
  }
  func.func @transform_3(%arg0: i32) -> (i32, i32) {
    %c0_i32 = arith.constant 0 : i32
    %c0_i32_0 = arith.constant 0 : i32
    %c0_i32_1 = arith.constant 0 : i32
    return %c0_i32, %c0_i32_0 : i32, i32
  }
  func.func @transform_4(%arg0: i32) -> (i32, i32) {
    %c0_i32 = arith.constant 0 : i32
    %c0_i32_0 = arith.constant 0 : i32
    return %arg0, %c0_i32 : i32, i32
  }
  func.func @transform_5(%arg0: i32) -> (i32, i32) {
    %c0_i32 = arith.constant 0 : i32
    %c0_i32_0 = arith.constant 0 : i32
    return %arg0, %c0_i32 : i32, i32
  }
}

</mosaic_0001>

<llo_original>
// kernel: tpu_custom_call.1
$region0: #{tpu_custom_call.1}
  #allocation0 [shape = 'u32[]', space=smem, size = 0x4, offset = 0x4, fixed_abs, tag = 'smem constant byte address 0x4 - core index']
  #allocation1 [shape = 'u32[144,128]{1,0:T(1,128)}', space=vmem, size = 0x12000, scoped, tag = 'internal scratch']
  #allocation2 [shape = 'f32[1,1]{1,0:T(1,128)S(6)}', space=smem, size = 0x200, scoped, tag = 'scoped memory for tpu_custom_call.1']
  #allocation3 [shape = 'f32[1,1]{1,0:T(1,128)S(6)}', space=smem, size = 0x200, scoped, tag = 'scoped memory for tpu_custom_call.1']
  %s0 = inlined_call_operand.<no memory space> [shape: f32[1,1], index: 0, kind: input, shape index: {}]
  %s1 = inlined_call_operand.<no memory space> [shape: f32[1,1], index: 1, kind: input, shape index: {}]
  %s2 = inlined_call_operand.vmem [shape: f32[128,8], index: 2, kind: input, shape index: {}]
  %s3 = inlined_call_operand.vmem [shape: f32[8,128], index: 3, kind: input, shape index: {}]
  %s4 = inlined_call_operand.vmem [shape: f32[8,128], index: 4, kind: input, shape index: {}]
  %s5 = inlined_call_operand.hbm [shape: f32[8,128], index: 5, kind: output, shape index: {}]
  %s6 = sld [smem:[#allocation0]]
  $region30: #{tpu_custom_call.1} parent=0
    _
  %s8 = ssub.s32 1, %s6
  %s9 = scalar_select 0, %s8, %s6
  %10 = sst [smem:[#allocation2]] %s0
  %11 = sst [smem:[#allocation3]] %s1
  $region1: #{tpu_custom_call.1} parent=0
    #allocation4 [shape = 'u8[4096]{0}', space=vmem, size = 0x1000, scoped, tag = 'output window, operand 0, single buffered']
    #allocation5 [shape = 's32[1]{0}', space=sflag, size = 0x4, scoped, tag = 'scoped memory for tpu_custom_call.1']
    %12 = vsyncpa [#allocation5], 0
    // Predicated region
    $region2: #{tpu_custom_call.1} parent=1 // pred_check
      _
    $region3: #{tpu_custom_call.1} parent=1 // pred_check_branch
      %14 = sbr.rel (0) target = $region5
    $region4: #{tpu_custom_call.1} parent=1 // pred_region
      _
    $region5: #{tpu_custom_call.1} parent=1 // pred_fallthru
      _
    // Predicated region
    $region6: #{tpu_custom_call.1} parent=1 // pred_check
      _
    $region7: #{tpu_custom_call.1} parent=1 // pred_check_branch
      %16 = sbr.rel (0) target = $region9
    $region8: #{tpu_custom_call.1} parent=1 // pred_region
      _
    $region9: #{tpu_custom_call.1} parent=1 // pred_fallthru
      _
    // Predicated region
    $region10: #{tpu_custom_call.1} parent=1 // pred_check
      _
    $region11: #{tpu_custom_call.1} parent=1 // pred_check_branch
      %18 = sbr.rel (0) target = $region13
    $region12: #{tpu_custom_call.1} parent=1 // pred_region
      _
    $region13: #{tpu_custom_call.1} parent=1 // pred_fallthru
      _
    // Predicated region
    $region14: #{tpu_custom_call.1} parent=1 // pred_check
      _
    $region15: #{tpu_custom_call.1} parent=1 // pred_check_branch
      %20 = sbr.rel (0) target = $region17
    $region16: #{tpu_custom_call.1} parent=1 // pred_region
      _
    $region17: #{tpu_custom_call.1} parent=1 // pred_fallthru
      _
    // Predicated region
    $region18: #{tpu_custom_call.1} parent=1 // pred_check
      _
    $region19: #{tpu_custom_call.1} parent=1 // pred_check_branch
      %22 = sbr.rel (0) target = $region21
    $region20: #{tpu_custom_call.1} parent=1 // pred_region
      _
    $region21: #{tpu_custom_call.1} parent=1 // pred_fallthru
      _
    %v23 = vld [vmem:[%s4] sm:$0xff]
    %v24 = vld [vmem:[%s2] sm:$0xff]
    %v25 = vld [vmem:[%s2 + $0x8] sm:$0xff]
    %v26 = vld [vmem:[%s2 + $0x10] sm:$0xff]
    %v27 = vld [vmem:[%s2 + $0x18] sm:$0xff]
    %v28 = vld [vmem:[%s2 + $0x20] sm:$0xff]
    %v29 = vld [vmem:[%s2 + $0x28] sm:$0xff]
    %v30 = vld [vmem:[%s2 + $0x30] sm:$0xff]
    %v31 = vld [vmem:[%s2 + $0x38] sm:$0xff]
    %v32 = vld [vmem:[%s2 + $0x40] sm:$0xff]
    %v33 = vld [vmem:[%s2 + $0x48] sm:$0xff]
    %v34 = vld [vmem:[%s2 + $0x50] sm:$0xff]
    %v35 = vld [vmem:[%s2 + $0x58] sm:$0xff]
    %v36 = vld [vmem:[%s2 + $0x60] sm:$0xff]
    %v37 = vld [vmem:[%s2 + $0x68] sm:$0xff]
    %v38 = vld [vmem:[%s2 + $0x70] sm:$0xff]
    %v39 = vld [vmem:[%s2 + $0x78] sm:$0xff]
    %v40 = vld [vmem:[%s3] sm:$0xff]
    %s41 = sld [smem:[#allocation2]]
    %s42 = sld [smem:[#allocation3]]
    %43 = vmatprep.subr.mxu0 0.0
    %44 = vmatpush1.msra.mxu0 %v24
    %45 = vmatprep.subr.mxu0 0.0
    %46 = vmatpush1.msra.mxu0 %v25
    %47 = vmatprep.subr.mxu0 0.0
    %48 = vmatpush1.msra.mxu0 %v26
    %49 = vmatprep.subr.mxu0 0.0
    %50 = vmatpush1.msra.mxu0 %v27
    %51 = vmatprep.subr.mxu0 0.0
    %52 = vmatpush1.msra.mxu0 %v28
    %53 = vmatprep.subr.mxu0 0.0
    %54 = vmatpush1.msra.mxu0 %v29
    %55 = vmatprep.subr.mxu0 0.0
    %56 = vmatpush1.msra.mxu0 %v30
    %57 = vmatprep.subr.mxu0 0.0
    %58 = vmatpush1.msra.mxu0 %v31
    %59 = vmatprep.subr.mxu0 0.0
    %60 = vmatpush1.msra.mxu0 %v32
    %61 = vmatprep.subr.mxu0 0.0
    %62 = vmatpush1.msra.mxu0 %v33
    %63 = vmatprep.subr.mxu0 0.0
    %64 = vmatpush1.msra.mxu0 %v34
    %65 = vmatprep.subr.mxu0 0.0
    %66 = vmatpush1.msra.mxu0 %v35
    %67 = vmatprep.subr.mxu0 0.0
    %68 = vmatpush1.msra.mxu0 %v36
    %69 = vmatprep.subr.mxu0 0.0
    %70 = vmatpush1.msra.mxu0 %v37
    %71 = vmatprep.subr.mxu0 0.0
    %72 = vmatpush1.msra.mxu0 %v38
    %73 = vmatprep.subr.mxu0 0.0
    %74 = vmatpush1.msra.mxu0 %v39
    %75 = vmatprep.subr.mxu0 0.0
    %76 = vmatpush1.msra.mxu0 0.0
    %77 = vmatprep.subr.mxu0 0.0
    %78 = vmatpush1.msra.mxu0 0.0
    %79 = vmatprep.subr.mxu0 0.0
    %80 = vmatpush1.msra.mxu0 0.0
    %81 = vmatprep.subr.mxu0 0.0
    %82 = vmatpush1.msra.mxu0 0.0
    %83 = vmatprep.subr.mxu0 0.0
    %84 = vmatpush1.msra.mxu0 0.0
    %85 = vmatprep.subr.mxu0 0.0
    %86 = vmatpush1.msra.mxu0 0.0
    %87 = vmatprep.subr.mxu0 0.0
    %88 = vmatpush1.msra.mxu0 0.0
    %89 = vmatprep.subr.mxu0 0.0
    %90 = vmatpush1.msra.mxu0 0.0
    %91 = vmatprep.subr.mxu0 0.0
    %92 = vmatpush1.msra.mxu0 0.0
    %93 = vmatprep.subr.mxu0 0.0
    %94 = vmatpush1.msra.mxu0 0.0
    %95 = vmatprep.subr.mxu0 0.0
    %96 = vmatpush1.msra.mxu0 0.0
    %97 = vmatprep.subr.mxu0 0.0
    %98 = vmatpush1.msra.mxu0 0.0
    %99 = vmatprep.subr.mxu0 0.0
    %100 = vmatpush1.msra.mxu0 0.0
    %101 = vmatprep.subr.mxu0 0.0
    %102 = vmatpush1.msra.mxu0 0.0
    %103 = vmatprep.subr.mxu0 0.0
    %104 = vmatpush1.msra.mxu0 0.0
    %105 = vmatprep.subr.mxu0 0.0
    %106 = vmatpush1.msra.mxu0 0.0
    %107 = vmatprep.mubr.f32.mxu0 0.0
    %108 = vmatmul.mubr.f32.gmra.mrb[0].mxu0 %v23
    %v109 = vpop.f32.mrb[0].mxu0
    %v110 = vadd.f32 0.0, %v109
    %v111 = vpop.f32.mrb[0].mxu0
    %112 = vdwg.mxu0
    %v113 = vmul.f32 %v110, 0.03125
    %vm114 = vcmask 64512
    %v116 = vsel %vm114, %v113, 0
    %118 = vmatprep.subr.mxu0 0.0
    %119 = vmatpush1.msra.mxu0 %v40
    %120 = vmatprep.subr.mxu0 0.0
    %121 = vmatpush1.msra.mxu0 0.0
    %122 = vmatprep.subr.mxu0 0.0
    %123 = vmatpush1.msra.mxu0 0.0
    %124 = vmatprep.subr.mxu0 0.0
    %125 = vmatpush1.msra.mxu0 0.0
    %126 = vmatprep.subr.mxu0 0.0
    %127 = vmatpush1.msra.mxu0 0.0
    %128 = vmatprep.subr.mxu0 0.0
    %129 = vmatpush1.msra.mxu0 0.0
    %130 = vmatprep.subr.mxu0 0.0
    %131 = vmatpush1.msra.mxu0 0.0
    %132 = vmatprep.subr.mxu0 0.0
    %133 = vmatpush1.msra.mxu0 0.0
    %134 = vmatprep.subr.mxu0 0.0
    %135 = vmatpush1.msra.mxu0 0.0
    %136 = vmatprep.subr.mxu0 0.0
    %137 = vmatpush1.msra.mxu0 0.0
    %138 = vmatprep.subr.mxu0 0.0
    %139 = vmatpush1.msra.mxu0 0.0
    %140 = vmatprep.subr.mxu0 0.0
    %141 = vmatpush1.msra.mxu0 0.0
    %142 = vmatprep.subr.mxu0 0.0
    %143 = vmatpush1.msra.mxu0 0.0
    %144 = vmatprep.subr.mxu0 0.0
    %145 = vmatpush1.msra.mxu0 0.0
    %146 = vmatprep.subr.mxu0 0.0
    %147 = vmatpush1.msra.mxu0 0.0
    %148 = vmatprep.subr.mxu0 0.0
    %149 = vmatpush1.msra.mxu0 0.0
    %150 = vmatprep.subr.mxu0 0.0
    %151 = vmatpush1.msra.mxu0 0.0
    %152 = vmatprep.subr.mxu0 0.0
    %153 = vmatpush1.msra.mxu0 0.0
    %154 = vmatprep.subr.mxu0 0.0
    %155 = vmatpush1.msra.mxu0 0.0
    %156 = vmatprep.subr.mxu0 0.0
    %157 = vmatpush1.msra.mxu0 0.0
    %158 = vmatprep.subr.mxu0 0.0
    %159 = vmatpush1.msra.mxu0 0.0
    %160 = vmatprep.subr.mxu0 0.0
    %161 = vmatpush1.msra.mxu0 0.0
    %162 = vmatprep.subr.mxu0 0.0
    %163 = vmatpush1.msra.mxu0 0.0
    %164 = vmatprep.subr.mxu0 0.0
    %165 = vmatpush1.msra.mxu0 0.0
    %166 = vmatprep.subr.mxu0 0.0
    %167 = vmatpush1.msra.mxu0 0.0
    %168 = vmatprep.subr.mxu0 0.0
    %169 = vmatpush1.msra.mxu0 0.0
    %170 = vmatprep.subr.mxu0 0.0
    %171 = vmatpush1.msra.mxu0 0.0
    %172 = vmatprep.subr.mxu0 0.0
    %173 = vmatpush1.msra.mxu0 0.0
    %174 = vmatprep.subr.mxu0 0.0
    %175 = vmatpush1.msra.mxu0 0.0
    %176 = vmatprep.subr.mxu0 0.0
    %177 = vmatpush1.msra.mxu0 0.0
    %178 = vmatprep.subr.mxu0 0.0
    %179 = vmatpush1.msra.mxu0 0.0
    %180 = vmatprep.subr.mxu0 0.0
    %181 = vmatpush1.msra.mxu0 0.0
    %182 = vmatprep.mubr.f32.mxu0 0.0
    %183 = vmatmul.mubr.f32.gmra.mrb[0].mxu0 %v116
    %v184 = vpop.f32.mrb[0].mxu0
    %v185 = vadd.f32 0.0, %v184
    %v186 = vpop.f32.mrb[0].mxu0
    %187 = vdwg.mxu0
    %v188 = vsub.f32 %v23, %v185
    %v189 = vmul.f32 %v188, %v188
    %190 = vmatprep.subr.mxu0 0.0
    %191 = vmatpush1.msra.mxu0 %v24
    %192 = vmatprep.subr.mxu0 0.0
    %193 = vmatpush1.msra.mxu0 %v25
    %194 = vmatprep.subr.mxu0 0.0
    %195 = vmatpush1.msra.mxu0 %v26
    %196 = vmatprep.subr.mxu0 0.0
    %197 = vmatpush1.msra.mxu0 %v27
    %198 = vmatprep.subr.mxu0 0.0
    %199 = vmatpush1.msra.mxu0 %v28
    %200 = vmatprep.subr.mxu0 0.0
    %201 = vmatpush1.msra.mxu0 %v29
    %202 = vmatprep.subr.mxu0 0.0
    %203 = vmatpush1.msra.mxu0 %v30
    %204 = vmatprep.subr.mxu0 0.0
    %205 = vmatpush1.msra.mxu0 %v31
    %206 = vmatprep.subr.mxu0 0.0
    %207 = vmatpush1.msra.mxu0 %v32
    %208 = vmatprep.subr.mxu0 0.0
    %209 = vmatpush1.msra.mxu0 %v33
    %210 = vmatprep.subr.mxu0 0.0
    %211 = vmatpush1.msra.mxu0 %v34
    %212 = vmatprep.subr.mxu0 0.0
    %213 = vmatpush1.msra.mxu0 %v35
    %214 = vmatprep.subr.mxu0 0.0
    %215 = vmatpush1.msra.mxu0 %v36
    %216 = vmatprep.subr.mxu0 0.0
    %217 = vmatpush1.msra.mxu0 %v37
    %218 = vmatprep.subr.mxu0 0.0
    %219 = vmatpush1.msra.mxu0 %v38
    %220 = vmatprep.subr.mxu0 0.0
    %221 = vmatpush1.msra.mxu0 %v39
    %222 = vmatprep.subr.mxu0 0.0
    %223 = vmatpush1.msra.mxu0 0.0
    %224 = vmatprep.subr.mxu0 0.0
    %225 = vmatpush1.msra.mxu0 0.0
    %226 = vmatprep.subr.mxu0 0.0
    %227 = vmatpush1.msra.mxu0 0.0
    %228 = vmatprep.subr.mxu0 0.0
    %229 = vmatpush1.msra.mxu0 0.0
    %230 = vmatprep.subr.mxu0 0.0
    %231 = vmatpush1.msra.mxu0 0.0
    %232 = vmatprep.subr.mxu0 0.0
    %233 = vmatpush1.msra.mxu0 0.0
    %234 = vmatprep.subr.mxu0 0.0
    %235 = vmatpush1.msra.mxu0 0.0
    %236 = vmatprep.subr.mxu0 0.0
    %237 = vmatpush1.msra.mxu0 0.0
    %238 = vmatprep.subr.mxu0 0.0
    %239 = vmatpush1.msra.mxu0 0.0
    %240 = vmatprep.subr.mxu0 0.0
    %241 = vmatpush1.msra.mxu0 0.0
    %242 = vmatprep.subr.mxu0 0.0
    %243 = vmatpush1.msra.mxu0 0.0
    %244 = vmatprep.subr.mxu0 0.0
    %245 = vmatpush1.msra.mxu0 0.0
    %246 = vmatprep.subr.mxu0 0.0
    %247 = vmatpush1.msra.mxu0 0.0
    %248 = vmatprep.subr.mxu0 0.0
    %249 = vmatpush1.msra.mxu0 0.0
    %250 = vmatprep.subr.mxu0 0.0
    %251 = vmatpush1.msra.mxu0 0.0
    %252 = vmatprep.subr.mxu0 0.0
    %253 = vmatpush1.msra.mxu0 0.0
    %254 = vmatprep.mubr.f32.mxu0 0.0
    %255 = vmatmul.mubr.f32.gmra.mrb[0].mxu0 %v189
    %v256 = vpop.f32.mrb[0].mxu0
    %v257 = vadd.f32 0.0, %v256
    %v258 = vpop.f32.mrb[0].mxu0
    %259 = vdwg.mxu0
    %v260 = vmul.f32 %v257, 0.032258064
    %v261 = vrsqrt.pop %v260
    %v262 = vmul.f32 %v260, %v261
    %vm263 = vcmp.eq.f32.partialorder %v260, inf
    %v264 = vsel %vm263, %v260, %v262
    %vm265 = vcmp.eq.f32.partialorder %v260, 0.0
    %v266 = vand.u32 %v260, 2147483648
    %v267 = vsel %vm265, %v266, %v264
    %v268 = vadd.f32 %v267, 1e-06
    %v269 = vstv %s41
    %v270 = vrcp.pop %v268
    %v271 = vmul.f32 %v269, %v270
    %v273 = vsel %vm114, %v271, 0
    %275 = vmatprep.subr.mxu0 0.0
    %276 = vmatpush1.msra.mxu0 %v40
    %277 = vmatprep.subr.mxu0 0.0
    %278 = vmatpush1.msra.mxu0 0.0
    %279 = vmatprep.subr.mxu0 0.0
    %280 = vmatpush1.msra.mxu0 0.0
    %281 = vmatprep.subr.mxu0 0.0
    %282 = vmatpush1.msra.mxu0 0.0
    %283 = vmatprep.subr.mxu0 0.0
    %284 = vmatpush1.msra.mxu0 0.0
    %285 = vmatprep.subr.mxu0 0.0
    %286 = vmatpush1.msra.mxu0 0.0
    %287 = vmatprep.subr.mxu0 0.0
    %288 = vmatpush1.msra.mxu0 0.0
    %289 = vmatprep.subr.mxu0 0.0
    %290 = vmatpush1.msra.mxu0 0.0
    %291 = vmatprep.subr.mxu0 0.0
    %292 = vmatpush1.msra.mxu0 0.0
    %293 = vmatprep.subr.mxu0 0.0
    %294 = vmatpush1.msra.mxu0 0.0
    %295 = vmatprep.subr.mxu0 0.0
    %296 = vmatpush1.msra.mxu0 0.0
    %297 = vmatprep.subr.mxu0 0.0
    %298 = vmatpush1.msra.mxu0 0.0
    %299 = vmatprep.subr.mxu0 0.0
    %300 = vmatpush1.msra.mxu0 0.0
    %301 = vmatprep.subr.mxu0 0.0
    %302 = vmatpush1.msra.mxu0 0.0
    %303 = vmatprep.subr.mxu0 0.0
    %304 = vmatpush1.msra.mxu0 0.0
    %305 = vmatprep.subr.mxu0 0.0
    %306 = vmatpush1.msra.mxu0 0.0
    %307 = vmatprep.subr.mxu0 0.0
    %308 = vmatpush1.msra.mxu0 0.0
    %309 = vmatprep.subr.mxu0 0.0
    %310 = vmatpush1.msra.mxu0 0.0
    %311 = vmatprep.subr.mxu0 0.0
    %312 = vmatpush1.msra.mxu0 0.0
    %313 = vmatprep.subr.mxu0 0.0
    %314 = vmatpush1.msra.mxu0 0.0
    %315 = vmatprep.subr.mxu0 0.0
    %316 = vmatpush1.msra.mxu0 0.0
    %317 = vmatprep.subr.mxu0 0.0
    %318 = vmatpush1.msra.mxu0 0.0
    %319 = vmatprep.subr.mxu0 0.0
    %320 = vmatpush1.msra.mxu0 0.0
    %321 = vmatprep.subr.mxu0 0.0
    %322 = vmatpush1.msra.mxu0 0.0
    %323 = vmatprep.subr.mxu0 0.0
    %324 = vmatpush1.msra.mxu0 0.0
    %325 = vmatprep.subr.mxu0 0.0
    %326 = vmatpush1.msra.mxu0 0.0
    %327 = vmatprep.subr.mxu0 0.0
    %328 = vmatpush1.msra.mxu0 0.0
    %329 = vmatprep.subr.mxu0 0.0
    %330 = vmatpush1.msra.mxu0 0.0
    %331 = vmatprep.subr.mxu0 0.0
    %332 = vmatpush1.msra.mxu0 0.0
    %333 = vmatprep.subr.mxu0 0.0
    %334 = vmatpush1.msra.mxu0 0.0
    %335 = vmatprep.subr.mxu0 0.0
    %336 = vmatpush1.msra.mxu0 0.0
    %337 = vmatprep.subr.mxu0 0.0
    %338 = vmatpush1.msra.mxu0 0.0
    %339 = vmatprep.mubr.f32.mxu0 0.0
    %340 = vmatmul.mubr.f32.gmra.mrb[0].mxu0 %v273
    %v341 = vpop.f32.mrb[0].mxu0
    %v342 = vadd.f32 0.0, %v341
    %v343 = vpop.f32.mrb[0].mxu0
    %344 = vdwg.mxu0
    %v345 = vmul.f32 %v188, %v342
    %v346 = vstv %s42
    %v347 = vadd.f32 %v345, %v346
    %348 = vst [vmem:[#allocation4] sm:$0xff] %v347
    // Predicated region
    $region22: #{tpu_custom_call.1} parent=1 // pred_check
      _
    $region23: #{tpu_custom_call.1} parent=1 // pred_check_branch
      %350 = sbr.rel (0) target = $region25
    $region24: #{tpu_custom_call.1} parent=1 // pred_region
      %s352 = ssub.s32 128, 128
      %353 = vsyncadd [#allocation5], %s352
      %s355 = sshll.u32 [#allocation4], 4
      %s356 = int_to_ptr.vmem [resolvable:$true] %s355
      %358 = dma.vmem_to_hbm [thread:$0]  %s356, 128, %s5, [#allocation5]
    $region25: #{tpu_custom_call.1} parent=1 // pred_fallthru
      _
    // Predicated region
    $region26: #{tpu_custom_call.1} parent=1 // pred_check
      _
    $region27: #{tpu_custom_call.1} parent=1 // pred_check_branch
      %360 = sbr.rel (0) target = $region29
    $region28: #{tpu_custom_call.1} parent=1 // pred_region
      %361 = dma.done [#allocation5], 128
    $region29: #{tpu_custom_call.1} parent=1 // pred_fallthru
      _
    %362 = vsyncpa [#allocation5], 1

</llo_original>
